<compile_context>
chip_gen: v7x
topology: tpu7x:2x2x1
jax: 0.10.0
libtpu: 0.0.40
codegen_flags: <defaults>
</compile_context>

<pallas_src>
import functools

import jax
import jax.numpy as jnp
from jax.experimental import pallas as pl
from jax.experimental.pallas import tpu as pltpu


def _round_up(x, m):
    return ((x + m - 1) // m) * m


def make_mlp_kernel(num_layers, activation):
    """Fused MLP kernel: in-kernel concat + chain of matmuls, all operands VMEM-resident."""

    def apply_act(x):
        if activation == "relu":
            return jnp.maximum(x, 0.0)
        if activation == "tanh":
            return jnp.tanh(x)
        if activation == "sigmoid":
            return jax.nn.sigmoid(x)
        return x

    def kernel(emb_ref, samp_ref, *refs):
        out_ref = refs[-1]
        # params = (w0, b0, w1, b1, ..., w_{L-1}, b_{L-1}); weights bf16, biases f32.
        params = refs[:-1]
        mm_dtype = params[0].dtype

        # Fused concat: one K=2*input_dim matmul instead of two split-K pushes.
        # The concat is an XLU lane move (different VLIW slot than the MXU push).
        x = jnp.concatenate([emb_ref[...], samp_ref[...]], axis=-1)
        if x.dtype != mm_dtype:
            x = x.astype(mm_dtype)

        for i in range(num_layers):
            w = params[2 * i][...]
            b = params[2 * i + 1][...]
            x = jnp.dot(x.astype(w.dtype), w, preferred_element_type=jnp.float32) + b
            if i < num_layers - 1:
                # bias add / activation stay in f32 (v5e has no bf16 VALU/EUP).
                x = apply_act(x)
                # dropout: identity (eval mode)

        out_ref[...] = x if x.dtype == out_ref.dtype else x.astype(out_ref.dtype)

    return kernel


def prepare_params(weights, biases, param_dtype=jnp.bfloat16, lane=128):
    """One-time parameter prep (outside the per-call path).

    weights[i]: (in_dim_i, out_dim_i) (already transposed vs PyTorch), biases[i]: (1, out_dim_i)
      - last layer zero-padded along its output dim to a multiple of 128 (lane-dense stores;
        padded output columns are exactly zero because weight+bias pad is zero)
      - weights cast to `param_dtype` (bf16), biases kept f32
    """
    weights = list(weights)
    biases = list(biases)
    out_dim = weights[-1].shape[1]
    out_pad = _round_up(out_dim, lane)
    if out_pad != out_dim:
        weights[-1] = jnp.pad(weights[-1], ((0, 0), (0, out_pad - out_dim)))
        biases[-1] = jnp.pad(biases[-1], ((0, 0), (0, out_pad - out_dim)))

    params = []
    for w, b in zip(weights, biases):
        params.append(w.astype(param_dtype))
        params.append(b.astype(jnp.float32))
    return tuple(params)


def _choose_batch_tile(B):
    """Batch tile: multiple of 16 (sublane-packed bf16 cast), up to 1024, >=2 grid steps
    when the batch is large enough (v7x has 2 TensorCores to shard the parallel axis)."""
    tb_max = 1024
    mult = 16 if B >= 16 else 8
    tb = min(tb_max, _round_up(B, mult))
    if pl.cdiv(B, tb) < 2 and B >= 32:
        tb = max(16, _round_up(pl.cdiv(B, 2), 16))
    return tb


@functools.partial(jax.jit, static_argnames=("activation", "return_padded"))
def neural_net_forward(input_embedding, x_samples, params, activation="relu",
                       return_padded=False):
    """Single fused Pallas MLP kernel (concat + all layers), batch tiled on the grid."""
    B, input_dim = input_embedding.shape
    num_layers = len(params) // 2
    out_pad = params[-1].shape[-1]
    out_dim = input_dim  # module: last layer outputs input_dim

    TB = _choose_batch_tile(B)

    # VMEM budget: resident params + double-buffered input tiles + double-buffered output
    # tile + activation working set. Keep under 48 MiB so it also fits v7x's 64 MiB VMEM.
    param_bytes = sum(int(p.size) * p.dtype.itemsize for p in params)
    widest = max([2 * input_dim] + [int(p.shape[-1]) for p in params[0::2]])

    def vmem_need(tb):
        in_tiles = 2 * 2 * tb * input_dim * 4     # 2 inputs, double-buffered, f32
        out_tiles = 2 * tb * out_pad * 4          # double-buffered f32 output tile
        act = 3 * tb * widest * 4                 # intermediate activations (rough)
        return param_bytes + in_tiles + out_tiles + act

    VMEM_BUDGET = 48 << 20
    while vmem_need(TB) > VMEM_BUDGET and TB > 16:
        TB = max(16, TB // 2)
    # TODO(synk): if param_bytes alone exceed the budget (very large layer_size), the hidden
    # weights should be pipelined over an extra "arbitrary" grid axis instead of being fully
    # VMEM-resident; not needed at these sizes.
    vmem_limit = int(min(max(vmem_need(TB) * 1.5, 32 << 20), 48 << 20))

    # Non-divisible grid: last block is partial; compute is row-local and OOB rows are
    # masked on store, so no wrapper-side jnp.pad (and its extra HBM round trip) is needed.
    grid = (pl.cdiv(B, TB),)

    in_specs = [
        pl.BlockSpec((TB, input_dim), lambda i: (i, 0)),
        pl.BlockSpec((TB, input_dim), lambda i: (i, 0)),
    ]
    # Grid-invariant params: whole-array VMEM residency (no per-step pipelining).
    in_specs += [pl.BlockSpec(memory_space=pltpu.MemorySpace.VMEM)] * len(params)

    # Advisory cost estimate (helps XLA schedule the custom call inside a larger jit).
    flops = 2 * B * sum(int(params[2 * i].shape[0]) * int(params[2 * i].shape[1])
                        for i in range(num_layers))
    transcendentals = 0
    if activation in ("tanh", "sigmoid") and num_layers > 1:
        transcendentals = B * sum(int(params[2 * i].shape[1]) for i in range(num_layers - 1))
    bytes_accessed = 2 * B * input_dim * 4 + param_bytes + B * out_pad * 4
    cost = pl.CostEstimate(flops=flops, transcendentals=transcendentals,
                           bytes_accessed=bytes_accessed)

    out = pl.pallas_call(
        make_mlp_kernel(num_layers, activation),
        out_shape=jax.ShapeDtypeStruct((B, out_pad), jnp.float32),
        grid=grid,
        in_specs=in_specs,
        out_specs=pl.BlockSpec((TB, out_pad), lambda i: (i, 0)),
        compiler_params=pltpu.CompilerParams(
            dimension_semantics=("parallel",),
            vmem_limit_bytes=vmem_limit,
        ),
        cost_estimate=cost,
    )(input_embedding, x_samples, *params)

    if return_padded:
        # Lane-dense (B, out_pad) buffer; padded columns are exactly zero. Lets the
        # consumer fuse the slice instead of paying a second HBM round trip here.
        return out
    return out[:, :out_dim]


def init_params(key, num_layers, layer_size, input_dim):
    """Deterministic PyTorch-style init: U(-1/sqrt(fan_in), 1/sqrt(fan_in))."""
    dims = [2 * input_dim] + [layer_size] * (num_layers - 1) + [input_dim]
    weights, biases = [], []
    for i in range(num_layers):
        fan_in, fan_out = dims[i], dims[i + 1]
        key, kw, kb = jax.random.split(key, 3)
        bound = 1.0 / (fan_in ** 0.5)
        w = jax.random.uniform(kw, (fan_in, fan_out), jnp.float32, -bound, bound)
        b = jax.random.uniform(kb, (1, fan_out), jnp.float32, -bound, bound)
        weights.append(w)
        biases.append(b)
    return tuple(weights), tuple(biases)


def reference_forward(input_embedding, x_samples, weights, biases, activation="relu"):
    """Pure-JAX f32 reference (PyTorch eval-mode semantics)."""
    x = jnp.concatenate([input_embedding, x_samples], axis=-1)
    for i, (w, b) in enumerate(zip(weights, biases)):
        x = x @ w + b
        if i < len(weights) - 1:
            if activation == "relu":
                x = jnp.maximum(x, 0.0)
            elif activation == "tanh":
                x = jnp.tanh(x)
            elif activation == "sigmoid":
                x = jax.nn.sigmoid(x)
    return x


if __name__ == "__main__":
    # Module hyperparameters (small, consistent with the forward)
    num_layers = 3
    layer_size = 128
    input_dim = 64
    activation = "relu"
    batch = 8

    key = jax.random.PRNGKey(0)
    key, k_emb, k_samp = jax.random.split(key, 3)
    input_embedding = jax.random.normal(k_emb, (batch, input_dim), jnp.float32)
    x_samples = jax.random.normal(k_samp, (batch, input_dim), jnp.float32)

    weights, biases = init_params(key, num_layers, layer_size, input_dim)

    # One-time param prep: pad last layer to 128 lanes, cast weights to bf16
    # (matmuls accumulate in f32 on the MXU).
    params = prepare_params(weights, biases, param_dtype=jnp.bfloat16)

    out = neural_net_forward(input_embedding, x_samples, params, activation)
    out = jax.block_until_ready(out)

    ref = reference_forward(input_embedding, x_samples, weights, biases, activation)
    assert out.shape == (batch, input_dim), out.shape
    # bf16 matmul operands vs f32 reference -> loose-but-meaningful tolerance.
    assert jnp.allclose(out, ref, atol=5e-2, rtol=5e-2), "mismatch vs reference"

    print("KERNEL_OK")
</pallas_src>

<mosaic_0001>
module attributes {stable_mosaic.version = 11 : i64} {
  func.func @kernel(%arg0: i32, %arg1: memref<8x64xf32, #tpu.memory_space<vmem>>, %arg2: memref<8x64xf32, #tpu.memory_space<vmem>>, %arg3: memref<128x128xbf16, #tpu.memory_space<vmem>>, %arg4: memref<1x128xf32, #tpu.memory_space<vmem>>, %arg5: memref<128x128xbf16, #tpu.memory_space<vmem>>, %arg6: memref<1x128xf32, #tpu.memory_space<vmem>>, %arg7: memref<128x128xbf16, #tpu.memory_space<vmem>>, %arg8: memref<1x128xf32, #tpu.memory_space<vmem>>, %arg9: memref<8x128xf32, #tpu.memory_space<vmem>>) attributes {dimension_semantics = [#tpu.dimension_semantics<parallel>], iteration_bounds = array<i64: 1>, scalar_prefetch = 0 : i64, scratch_operands = 0 : i64, tpu.core_type = #tpu.core_type<tc>, window_params = [{transform_indices = @transform_0, window_bounds = array<i64: 8, 64>}, {transform_indices = @transform_1, window_bounds = array<i64: 8, 64>}, {pipeline_mode = #tpu.pipeline_mode<synchronous>, transform_indices = @transform_2, window_bounds = array<i64: 128, 128>}, {pipeline_mode = #tpu.pipeline_mode<synchronous>, transform_indices = @transform_3, window_bounds = array<i64: 1, 128>}, {pipeline_mode = #tpu.pipeline_mode<synchronous>, transform_indices = @transform_4, window_bounds = array<i64: 128, 128>}, {pipeline_mode = #tpu.pipeline_mode<synchronous>, transform_indices = @transform_5, window_bounds = array<i64: 1, 128>}, {pipeline_mode = #tpu.pipeline_mode<synchronous>, transform_indices = @transform_6, window_bounds = array<i64: 128, 128>}, {pipeline_mode = #tpu.pipeline_mode<synchronous>, transform_indices = @transform_7, window_bounds = array<i64: 1, 128>}, {transform_indices = @transform_8, window_bounds = array<i64: 8, 128>}]} {
    %c0 = arith.constant 0 : index
    %c0_0 = arith.constant 0 : index
    %0 = vector.load %arg1[%c0, %c0_0] : memref<8x64xf32, #tpu.memory_space<vmem>>, vector<8x64xf32>
    %c0_1 = arith.constant 0 : index
    %c0_2 = arith.constant 0 : index
    %1 = vector.load %arg2[%c0_1, %c0_2] : memref<8x64xf32, #tpu.memory_space<vmem>>, vector<8x64xf32>
    %2 = tpu.concatenate %0, %1 in 1 : vector<8x64xf32>, vector<8x64xf32> -> vector<8x128xf32>
    %3 = arith.truncf %2 : vector<8x128xf32> to vector<8x128xbf16>
    %c0_3 = arith.constant 0 : index
    %c0_4 = arith.constant 0 : index
    %4 = vector.load %arg3[%c0_3, %c0_4] : memref<128x128xbf16, #tpu.memory_space<vmem>>, vector<128x128xbf16>
    %c0_5 = arith.constant 0 : index
    %c0_6 = arith.constant 0 : index
    %5 = vector.load %arg4[%c0_5, %c0_6] : memref<1x128xf32, #tpu.memory_space<vmem>>, vector<1x128xf32>
    %cst = arith.constant dense<0.000000e+00> : vector<8x128xf32>
    %6 = tpu.matmul %3, %4, %cst {dimension_numbers = #tpu.dot_dimension_numbers<[1], [0], [0], [1], [0, 0, 1, 1], [], []>} : vector<8x128xbf16>, vector<128x128xbf16>, vector<8x128xf32> -> vector<8x128xf32>
    %7 = vector.broadcast %5 : vector<1x128xf32> to vector<8x128xf32>
    %8 = arith.addf %6, %7 : vector<8x128xf32>
    %cst_7 = arith.constant 0.000000e+00 : f32
    %9 = vector.broadcast %cst_7 : f32 to vector<8x128xf32>
    %10 = arith.maximumf %8, %9 : vector<8x128xf32>
    %c0_8 = arith.constant 0 : index
    %c0_9 = arith.constant 0 : index
    %11 = vector.load %arg5[%c0_8, %c0_9] : memref<128x128xbf16, #tpu.memory_space<vmem>>, vector<128x128xbf16>
    %c0_10 = arith.constant 0 : index
    %c0_11 = arith.constant 0 : index
    %12 = vector.load %arg6[%c0_10, %c0_11] : memref<1x128xf32, #tpu.memory_space<vmem>>, vector<1x128xf32>
    %13 = arith.truncf %10 : vector<8x128xf32> to vector<8x128xbf16>
    %cst_12 = arith.constant dense<0.000000e+00> : vector<8x128xf32>
    %14 = tpu.matmul %13, %11, %cst_12 {dimension_numbers = #tpu.dot_dimension_numbers<[1], [0], [0], [1], [0, 0, 1, 1], [], []>} : vector<8x128xbf16>, vector<128x128xbf16>, vector<8x128xf32> -> vector<8x128xf32>
    %15 = vector.broadcast %12 : vector<1x128xf32> to vector<8x128xf32>
    %16 = arith.addf %14, %15 : vector<8x128xf32>
    %cst_13 = arith.constant 0.000000e+00 : f32
    %17 = vector.broadcast %cst_13 : f32 to vector<8x128xf32>
    %18 = arith.maximumf %16, %17 : vector<8x128xf32>
    %c0_14 = arith.constant 0 : index
    %c0_15 = arith.constant 0 : index
    %19 = vector.load %arg7[%c0_14, %c0_15] : memref<128x128xbf16, #tpu.memory_space<vmem>>, vector<128x128xbf16>
    %c0_16 = arith.constant 0 : index
    %c0_17 = arith.constant 0 : index
    %20 = vector.load %arg8[%c0_16, %c0_17] : memref<1x128xf32, #tpu.memory_space<vmem>>, vector<1x128xf32>
    %21 = arith.truncf %18 : vector<8x128xf32> to vector<8x128xbf16>
    %cst_18 = arith.constant dense<0.000000e+00> : vector<8x128xf32>
    %22 = tpu.matmul %21, %19, %cst_18 {dimension_numbers = #tpu.dot_dimension_numbers<[1], [0], [0], [1], [0, 0, 1, 1], [], []>} : vector<8x128xbf16>, vector<128x128xbf16>, vector<8x128xf32> -> vector<8x128xf32>
    %23 = vector.broadcast %20 : vector<1x128xf32> to vector<8x128xf32>
    %24 = arith.addf %22, %23 : vector<8x128xf32>
    %c0_19 = arith.constant 0 : index
    %c0_20 = arith.constant 0 : index
    %25 = vector.load %arg9[%c0_19, %c0_20] : memref<8x128xf32, #tpu.memory_space<vmem>>, vector<8x128xf32>
    tpu.vector_store %arg9[%c0_19, %c0_20], %24 {strides = array<i32>} : memref<8x128xf32, #tpu.memory_space<vmem>>, vector<8x128xf32>,
    return
  }
  func.func @transform_0(%arg0: i32) -> (i32, i32) {
    %c0_i32 = arith.constant 0 : i32
    %c0_i32_0 = arith.constant 0 : i32
    return %arg0, %c0_i32 : i32, i32
  }
  func.func @transform_1(%arg0: i32) -> (i32, i32) {
    %c0_i32 = arith.constant 0 : i32
    %c0_i32_0 = arith.constant 0 : i32
    return %arg0, %c0_i32 : i32, i32
  }
  func.func @transform_2(%arg0: i32) -> (i32, i32) {
    %c0_i32 = arith.constant 0 : i32
    %c0_i32_0 = arith.constant 0 : i32
    %c0_i32_1 = arith.constant 0 : i32
    return %c0_i32, %c0_i32_0 : i32, i32
  }
  func.func @transform_3(%arg0: i32) -> (i32, i32) {
    %c0_i32 = arith.constant 0 : i32
    %c0_i32_0 = arith.constant 0 : i32
    %c0_i32_1 = arith.constant 0 : i32
    return %c0_i32, %c0_i32_0 : i32, i32
  }
  func.func @transform_4(%arg0: i32) -> (i32, i32) {
    %c0_i32 = arith.constant 0 : i32
    %c0_i32_0 = arith.constant 0 : i32
    %c0_i32_1 = arith.constant 0 : i32
    return %c0_i32, %c0_i32_0 : i32, i32
  }
  func.func @transform_5(%arg0: i32) -> (i32, i32) {
    %c0_i32 = arith.constant 0 : i32
    %c0_i32_0 = arith.constant 0 : i32
    %c0_i32_1 = arith.constant 0 : i32
    return %c0_i32, %c0_i32_0 : i32, i32
  }
  func.func @transform_6(%arg0: i32) -> (i32, i32) {
    %c0_i32 = arith.constant 0 : i32
    %c0_i32_0 = arith.constant 0 : i32
    %c0_i32_1 = arith.constant 0 : i32
    return %c0_i32, %c0_i32_0 : i32, i32
  }
  func.func @transform_7(%arg0: i32) -> (i32, i32) {
    %c0_i32 = arith.constant 0 : i32
    %c0_i32_0 = arith.constant 0 : i32
    %c0_i32_1 = arith.constant 0 : i32
    return %c0_i32, %c0_i32_0 : i32, i32
  }
  func.func @transform_8(%arg0: i32) -> (i32, i32) {
    %c0_i32 = arith.constant 0 : i32
    %c0_i32_0 = arith.constant 0 : i32
    return %arg0, %c0_i32 : i32, i32
  }
}

</mosaic_0001>

<llo_original>
// kernel: neural_net_forward.1
$region0: #{neural_net_forward.1}
  #allocation0 [shape = 'u32[]', space=smem, size = 0x4, offset = 0x4, fixed_abs, tag = 'smem constant byte address 0x4 - core index']
  #allocation1 [shape = 'u32[144,128]{1,0:T(1,128)}', space=vmem, size = 0x12000, scoped, tag = 'internal scratch']
  %s0 = inlined_call_operand.hbm [shape: f32[8,64], index: 0, kind: input, shape index: {}]
  %s1 = inlined_call_operand.hbm [shape: f32[8,64], index: 1, kind: input, shape index: {}]
  %s2 = inlined_call_operand.hbm [shape: bf16[128,128], index: 2, kind: input, shape index: {}]
  %s3 = inlined_call_operand.vmem [shape: f32[1,128], index: 3, kind: input, shape index: {}]
  %s4 = inlined_call_operand.hbm [shape: bf16[128,128], index: 4, kind: input, shape index: {}]
  %s5 = inlined_call_operand.vmem [shape: f32[1,128], index: 5, kind: input, shape index: {}]
  %s6 = inlined_call_operand.hbm [shape: bf16[128,128], index: 6, kind: input, shape index: {}]
  %s7 = inlined_call_operand.vmem [shape: f32[1,128], index: 7, kind: input, shape index: {}]
  %s8 = inlined_call_operand.hbm [shape: f32[8,128], index: 8, kind: output, shape index: {}]
  %s9 = sld [smem:[#allocation0]]
  $region62: #{neural_net_forward.1} parent=0
    _
  %s11 = ssub.s32 1, %s9
  %s12 = scalar_select 0, %s11, %s9
  $region1: #{neural_net_forward.1} parent=0
    #allocation2 [shape = 'u8[4096]{0}', space=vmem, size = 0x1000, scoped, tag = 'input window, operand 0, single buffered']
    #allocation3 [shape = 's32[1]{0}', space=sflag, size = 0x4, scoped, tag = 'scoped memory for neural_net_forward.1']
    #allocation4 [shape = 's32[1]{0}', space=sflag, size = 0x4, scoped, tag = 'scoped memory for neural_net_forward.1']
    #allocation5 [shape = 'u8[4096]{0}', space=vmem, size = 0x1000, scoped, tag = 'input window, operand 1, single buffered']
    #allocation6 [shape = 's32[1]{0}', space=sflag, size = 0x4, scoped, tag = 'scoped memory for neural_net_forward.1']
    #allocation7 [shape = 'u8[32768]{0}', space=vmem, size = 0x8000, scoped, tag = 'input window, operand 2, single buffered']
    #allocation8 [shape = 'u8[32768]{0}', space=vmem, size = 0x8000, scoped, tag = 'input window, operand 4, single buffered']
    #allocation9 [shape = 's32[1]{0}', space=sflag, size = 0x4, scoped, tag = 'scoped memory for neural_net_forward.1']
    #allocation10 [shape = 'u8[32768]{0}', space=vmem, size = 0x8000, scoped, tag = 'input window, operand 6, single buffered']
    #allocation11 [shape = 'u8[4096]{0}', space=vmem, size = 0x1000, scoped, tag = 'output window, operand 0, single buffered']
    %13 = vsyncpa [#allocation3], 0
    %14 = vsyncpa [#allocation6], 0
    %15 = vsyncpa [#allocation9], 0
    %16 = vsyncpa [#allocation4], 0
    // Predicated region
    $region2: #{neural_net_forward.1} parent=1 // pred_check
      _
    $region3: #{neural_net_forward.1} parent=1 // pred_check_branch
      %18 = sbr.rel (0) target = $region5
    $region4: #{neural_net_forward.1} parent=1 // pred_region
      %s20 = ssub.s32 128, 128
      %21 = vsyncadd [#allocation3], %s20
      %s23 = sshll.u32 [#allocation2], 4
      %s24 = int_to_ptr.vmem [resolvable:$true] %s23
      %26 = dma.hbm_to_vmem [thread:$0]  %s0, 128, %s24, [#allocation3]
    $region5: #{neural_net_forward.1} parent=1 // pred_fallthru
      _
    // Predicated region
    $region6: #{neural_net_forward.1} parent=1 // pred_check
      _
    $region7: #{neural_net_forward.1} parent=1 // pred_check_branch
      %28 = sbr.rel (0) target = $region9
    $region8: #{neural_net_forward.1} parent=1 // pred_region
      %s30 = ssub.s32 128, 128
      %31 = vsyncadd [#allocation6], %s30
      %s33 = sshll.u32 [#allocation5], 4
      %s34 = int_to_ptr.vmem [resolvable:$true] %s33
      %36 = dma.hbm_to_vmem [thread:$0]  %s1, 128, %s34, [#allocation6]
    $region9: #{neural_net_forward.1} parent=1 // pred_fallthru
      _
    // Predicated region
    $region10: #{neural_net_forward.1} parent=1 // pred_check
      _
    $region11: #{neural_net_forward.1} parent=1 // pred_check_branch
      %38 = sbr.rel (0) target = $region13
    $region12: #{neural_net_forward.1} parent=1 // pred_region
      %s40 = ssub.s32 1024, 1024
      %41 = vsyncadd [#allocation6], %s40
      %s42 = sshll.u32 [#allocation7], 4
      %s43 = int_to_ptr.vmem [resolvable:$true] %s42
      %48 = dma.hbm_to_vmem [thread:$0]  %s2, 1024, %s43, [#allocation6], 64, 64, 4
    $region13: #{neural_net_forward.1} parent=1 // pred_fallthru
      _
    // Predicated region
    $region14: #{neural_net_forward.1} parent=1 // pred_check
      _
    $region15: #{neural_net_forward.1} parent=1 // pred_check_branch
      %50 = sbr.rel (0) target = $region17
    $region16: #{neural_net_forward.1} parent=1 // pred_region
      _
    $region17: #{neural_net_forward.1} parent=1 // pred_fallthru
      _
    // Predicated region
    $region18: #{neural_net_forward.1} parent=1 // pred_check
      _
    $region19: #{neural_net_forward.1} parent=1 // pred_check_branch
      %52 = sbr.rel (0) target = $region21
    $region20: #{neural_net_forward.1} parent=1 // pred_region
      %s54 = ssub.s32 1024, 1024
      %55 = vsyncadd [#allocation9], %s54
      %s56 = sshll.u32 [#allocation8], 4
      %s57 = int_to_ptr.vmem [resolvable:$true] %s56
      %62 = dma.hbm_to_vmem [thread:$0]  %s4, 1024, %s57, [#allocation9], 64, 64, 4
    $region21: #{neural_net_forward.1} parent=1 // pred_fallthru
      _
    // Predicated region
    $region22: #{neural_net_forward.1} parent=1 // pred_check
      _
    $region23: #{neural_net_forward.1} parent=1 // pred_check_branch
      %64 = sbr.rel (0) target = $region25
    $region24: #{neural_net_forward.1} parent=1 // pred_region
      _
    $region25: #{neural_net_forward.1} parent=1 // pred_fallthru
      _
    // Predicated region
    $region26: #{neural_net_forward.1} parent=1 // pred_check
      _
    $region27: #{neural_net_forward.1} parent=1 // pred_check_branch
      %66 = sbr.rel (0) target = $region29
    $region28: #{neural_net_forward.1} parent=1 // pred_region
      %s68 = ssub.s32 1024, 1024
      %69 = vsyncadd [#allocation9], %s68
      %s70 = sshll.u32 [#allocation10], 4
      %s71 = int_to_ptr.vmem [resolvable:$true] %s70
      %76 = dma.hbm_to_vmem [thread:$0]  %s6, 1024, %s71, [#allocation9], 64, 64, 4
    $region29: #{neural_net_forward.1} parent=1 // pred_fallthru
      _
    // Predicated region
    $region30: #{neural_net_forward.1} parent=1 // pred_check
      _
    $region31: #{neural_net_forward.1} parent=1 // pred_check_branch
      %78 = sbr.rel (0) target = $region33
    $region32: #{neural_net_forward.1} parent=1 // pred_region
      _
    $region33: #{neural_net_forward.1} parent=1 // pred_fallthru
      _
    // Predicated region
    $region34: #{neural_net_forward.1} parent=1 // pred_check
      _
    $region35: #{neural_net_forward.1} parent=1 // pred_check_branch
      %80 = sbr.rel (0) target = $region37
    $region36: #{neural_net_forward.1} parent=1 // pred_region
      %81 = dma.done [#allocation3], 128
    $region37: #{neural_net_forward.1} parent=1 // pred_fallthru
      _
    // Predicated region
    $region38: #{neural_net_forward.1} parent=1 // pred_check
      _
    $region39: #{neural_net_forward.1} parent=1 // pred_check_branch
      %83 = sbr.rel (0) target = $region41
    $region40: #{neural_net_forward.1} parent=1 // pred_region
      %84 = dma.done [#allocation6], 128
    $region41: #{neural_net_forward.1} parent=1 // pred_fallthru
      _
    // Predicated region
    $region42: #{neural_net_forward.1} parent=1 // pred_check
      _
    $region43: #{neural_net_forward.1} parent=1 // pred_check_branch
      %86 = sbr.rel (0) target = $region45
    $region44: #{neural_net_forward.1} parent=1 // pred_region
      %87 = dma.done [#allocation6], 1024
    $region45: #{neural_net_forward.1} parent=1 // pred_fallthru
      _
    // Predicated region
    $region46: #{neural_net_forward.1} parent=1 // pred_check
      _
    $region47: #{neural_net_forward.1} parent=1 // pred_check_branch
      %89 = sbr.rel (0) target = $region49
    $region48: #{neural_net_forward.1} parent=1 // pred_region
      %90 = dma.done [#allocation9], 1024
    $region49: #{neural_net_forward.1} parent=1 // pred_fallthru
      _
    // Predicated region
    $region50: #{neural_net_forward.1} parent=1 // pred_check
      _
    $region51: #{neural_net_forward.1} parent=1 // pred_check_branch
      %92 = sbr.rel (0) target = $region53
    $region52: #{neural_net_forward.1} parent=1 // pred_region
      %93 = dma.done [#allocation9], 1024
    $region53: #{neural_net_forward.1} parent=1 // pred_fallthru
      _
    %v95 = vld [vmem:[#allocation2] sm:$0xff]
    %v96 = vld [vmem:[#allocation5] sm:$0xff]
    %98 = vrot.lane.b32.xlu0 %v96, 64
    %v99 = vpop.permute.xlu0 %98
    %vm101 = vcmask 523264
    %v102 = vsel %vm101, %v95, %v99
    %v103 = vpack.c.bf16 %v102, %v102
    %v104 = vld [vmem:[#allocation7] sm:$0xf]
    %v105 = vld [vmem:[#allocation7 + $0x4] sm:$0xf]
    %v106 = vld [vmem:[#allocation7 + $0x8] sm:$0xf]
    %v107 = vld [vmem:[#allocation7 + $0xc] sm:$0xf]
    %v108 = vld [vmem:[#allocation7 + $0x10] sm:$0xf]
    %v109 = vld [vmem:[#allocation7 + $0x14] sm:$0xf]
    %v110 = vld [vmem:[#allocation7 + $0x18] sm:$0xf]
    %v111 = vld [vmem:[#allocation7 + $0x1c] sm:$0xf]
    %v112 = vld [vmem:[#allocation7 + $0x20] sm:$0xf]
    %v113 = vld [vmem:[#allocation7 + $0x24] sm:$0xf]
    %v114 = vld [vmem:[#allocation7 + $0x28] sm:$0xf]
    %v115 = vld [vmem:[#allocation7 + $0x2c] sm:$0xf]
    %v116 = vld [vmem:[#allocation7 + $0x30] sm:$0xf]
    %v117 = vld [vmem:[#allocation7 + $0x34] sm:$0xf]
    %v118 = vld [vmem:[#allocation7 + $0x38] sm:$0xf]
    %v119 = vld [vmem:[#allocation7 + $0x3c] sm:$0xf]
    %v120 = vld [vmem:[%s3] sm:$0x1]
    %v122 = vlaneseq
    %v123 = vshrl.u32 %v122, 7
    %v124 = vsub.s32 0, %v123
    %v125 = vrot.slane %v120, %v124
    %v143 = vunpack.c.l.b16 %v104
    %v144 = vunpack.c.l.b16 %v105
    %v145 = vunpack.c.l.b16 %v106
    %v146 = vunpack.c.l.b16 %v107
    %v147 = vunpack.c.l.b16 %v108
    %v148 = vunpack.c.l.b16 %v109
    %v149 = vunpack.c.l.b16 %v110
    %v150 = vunpack.c.l.b16 %v111
    %v151 = vunpack.c.l.b16 %v112
    %v152 = vunpack.c.l.b16 %v113
    %v153 = vunpack.c.l.b16 %v114
    %v154 = vunpack.c.l.b16 %v115
    %v155 = vunpack.c.l.b16 %v116
    %v156 = vunpack.c.l.b16 %v117
    %v157 = vunpack.c.l.b16 %v118
    %v158 = vunpack.c.l.b16 %v119
    %v159 = vpack.c.b16 %v144, %v143
    %v160 = vpack.c.b16 %v146, %v145
    %v161 = vpack.c.b16 %v148, %v147
    %v162 = vpack.c.b16 %v150, %v149
    %v163 = vpack.c.b16 %v152, %v151
    %v164 = vpack.c.b16 %v154, %v153
    %v165 = vpack.c.b16 %v156, %v155
    %v166 = vpack.c.b16 %v158, %v157
    %175 = vmatprep.subr.bf16.mxu0 0
    %176 = vmatpush1.bf16.msra.mxu0 %v159
    %177 = vmatprep.subr.bf16.mxu0 0
    %178 = vmatpush1.bf16.msra.mxu0 %v160
    %179 = vmatprep.subr.bf16.mxu0 0
    %180 = vmatpush1.bf16.msra.mxu0 %v161
    %181 = vmatprep.subr.bf16.mxu0 0
    %182 = vmatpush1.bf16.msra.mxu0 %v162
    %183 = vmatprep.subr.bf16.mxu0 0
    %184 = vmatpush1.bf16.msra.mxu0 %v163
    %185 = vmatprep.subr.bf16.mxu0 0
    %186 = vmatpush1.bf16.msra.mxu0 %v164
    %187 = vmatprep.subr.bf16.mxu0 0
    %188 = vmatpush1.bf16.msra.mxu0 %v165
    %189 = vmatprep.subr.bf16.mxu0 0
    %190 = vmatpush1.bf16.msra.mxu0 %v166
    %191 = vmatprep.subr.bf16.mxu0 0
    %192 = vmatpush1.bf16.msra.mxu0 0
    %193 = vmatprep.subr.bf16.mxu0 0
    %194 = vmatpush1.bf16.msra.mxu0 0
    %195 = vmatprep.subr.bf16.mxu0 0
    %196 = vmatpush1.bf16.msra.mxu0 0
    %197 = vmatprep.subr.bf16.mxu0 0
    %198 = vmatpush1.bf16.msra.mxu0 0
    %199 = vmatprep.subr.bf16.mxu0 0
    %200 = vmatpush1.bf16.msra.mxu0 0
    %201 = vmatprep.subr.bf16.mxu0 0
    %202 = vmatpush1.bf16.msra.mxu0 0
    %203 = vmatprep.subr.bf16.mxu0 0
    %204 = vmatpush1.bf16.msra.mxu0 0
    %205 = vmatprep.subr.bf16.mxu0 0
    %206 = vmatpush1.bf16.msra.mxu0 0
    %207 = vmatprep.mubr.bf16.mxu0 0
    %208 = vmatmul.mubr.bf16.gmra.mrb[0].mxu0 %v103
    %v209 = vpop.f32.mrb[0].mxu0
    %v210 = vadd.f32 %v125, %v209
    %v211 = vpop.f32.mrb[0].mxu0
    %v212 = vpop.f32.mrb[0].mxu0
    %v213 = vpop.f32.mrb[0].mxu0
    %214 = vdwg.mxu0
    %v215 = vmax.f32 %v210, 0.0
    %v216 = vld [vmem:[#allocation8] sm:$0xf]
    %v217 = vld [vmem:[#allocation8 + $0x4] sm:$0xf]
    %v218 = vld [vmem:[#allocation8 + $0x8] sm:$0xf]
    %v219 = vld [vmem:[#allocation8 + $0xc] sm:$0xf]
    %v220 = vld [vmem:[#allocation8 + $0x10] sm:$0xf]
    %v221 = vld [vmem:[#allocation8 + $0x14] sm:$0xf]
    %v222 = vld [vmem:[#allocation8 + $0x18] sm:$0xf]
    %v223 = vld [vmem:[#allocation8 + $0x1c] sm:$0xf]
    %v224 = vld [vmem:[#allocation8 + $0x20] sm:$0xf]
    %v225 = vld [vmem:[#allocation8 + $0x24] sm:$0xf]
    %v226 = vld [vmem:[#allocation8 + $0x28] sm:$0xf]
    %v227 = vld [vmem:[#allocation8 + $0x2c] sm:$0xf]
    %v228 = vld [vmem:[#allocation8 + $0x30] sm:$0xf]
    %v229 = vld [vmem:[#allocation8 + $0x34] sm:$0xf]
    %v230 = vld [vmem:[#allocation8 + $0x38] sm:$0xf]
    %v231 = vld [vmem:[#allocation8 + $0x3c] sm:$0xf]
    %v232 = vld [vmem:[%s5] sm:$0x1]
    %v233 = vpack.c.bf16 %v215, %v215
    %v235 = vlaneseq
    %v236 = vshrl.u32 %v235, 7
    %v237 = vsub.s32 0, %v236
    %v238 = vrot.slane %v232, %v237
    %v256 = vunpack.c.l.b16 %v216
    %v257 = vunpack.c.l.b16 %v217
    %v258 = vunpack.c.l.b16 %v218
    %v259 = vunpack.c.l.b16 %v219
    %v260 = vunpack.c.l.b16 %v220
    %v261 = vunpack.c.l.b16 %v221
    %v262 = vunpack.c.l.b16 %v222
    %v263 = vunpack.c.l.b16 %v223
    %v264 = vunpack.c.l.b16 %v224
    %v265 = vunpack.c.l.b16 %v225
    %v266 = vunpack.c.l.b16 %v226
    %v267 = vunpack.c.l.b16 %v227
    %v268 = vunpack.c.l.b16 %v228
    %v269 = vunpack.c.l.b16 %v229
    %v270 = vunpack.c.l.b16 %v230
    %v271 = vunpack.c.l.b16 %v231
    %v272 = vpack.c.b16 %v257, %v256
    %v273 = vpack.c.b16 %v259, %v258
    %v274 = vpack.c.b16 %v261, %v260
    %v275 = vpack.c.b16 %v263, %v262
    %v276 = vpack.c.b16 %v265, %v264
    %v277 = vpack.c.b16 %v267, %v266
    %v278 = vpack.c.b16 %v269, %v268
    %v279 = vpack.c.b16 %v271, %v270
    %288 = vmatprep.subr.bf16.mxu0 0
    %289 = vmatpush1.bf16.msra.mxu0 %v272
    %290 = vmatprep.subr.bf16.mxu0 0
    %291 = vmatpush1.bf16.msra.mxu0 %v273
    %292 = vmatprep.subr.bf16.mxu0 0
    %293 = vmatpush1.bf16.msra.mxu0 %v274
    %294 = vmatprep.subr.bf16.mxu0 0
    %295 = vmatpush1.bf16.msra.mxu0 %v275
    %296 = vmatprep.subr.bf16.mxu0 0
    %297 = vmatpush1.bf16.msra.mxu0 %v276
    %298 = vmatprep.subr.bf16.mxu0 0
    %299 = vmatpush1.bf16.msra.mxu0 %v277
    %300 = vmatprep.subr.bf16.mxu0 0
    %301 = vmatpush1.bf16.msra.mxu0 %v278
    %302 = vmatprep.subr.bf16.mxu0 0
    %303 = vmatpush1.bf16.msra.mxu0 %v279
    %304 = vmatprep.subr.bf16.mxu0 0
    %305 = vmatpush1.bf16.msra.mxu0 0
    %306 = vmatprep.subr.bf16.mxu0 0
    %307 = vmatpush1.bf16.msra.mxu0 0
    %308 = vmatprep.subr.bf16.mxu0 0
    %309 = vmatpush1.bf16.msra.mxu0 0
    %310 = vmatprep.subr.bf16.mxu0 0
    %311 = vmatpush1.bf16.msra.mxu0 0
    %312 = vmatprep.subr.bf16.mxu0 0
    %313 = vmatpush1.bf16.msra.mxu0 0
    %314 = vmatprep.subr.bf16.mxu0 0
    %315 = vmatpush1.bf16.msra.mxu0 0
    %316 = vmatprep.subr.bf16.mxu0 0
    %317 = vmatpush1.bf16.msra.mxu0 0
    %318 = vmatprep.subr.bf16.mxu0 0
    %319 = vmatpush1.bf16.msra.mxu0 0
    %320 = vmatprep.mubr.bf16.mxu0 0
    %321 = vmatmul.mubr.bf16.gmra.mrb[0].mxu0 %v233
    %v322 = vpop.f32.mrb[0].mxu0
    %v323 = vadd.f32 %v238, %v322
    %v324 = vpop.f32.mrb[0].mxu0
    %v325 = vpop.f32.mrb[0].mxu0
    %v326 = vpop.f32.mrb[0].mxu0
    %327 = vdwg.mxu0
    %v328 = vmax.f32 %v323, 0.0
    %v329 = vld [vmem:[#allocation10] sm:$0xf]
    %v330 = vld [vmem:[#allocation10 + $0x4] sm:$0xf]
    %v331 = vld [vmem:[#allocation10 + $0x8] sm:$0xf]
    %v332 = vld [vmem:[#allocation10 + $0xc] sm:$0xf]
    %v333 = vld [vmem:[#allocation10 + $0x10] sm:$0xf]
    %v334 = vld [vmem:[#allocation10 + $0x14] sm:$0xf]
    %v335 = vld [vmem:[#allocation10 + $0x18] sm:$0xf]
    %v336 = vld [vmem:[#allocation10 + $0x1c] sm:$0xf]
    %v337 = vld [vmem:[#allocation10 + $0x20] sm:$0xf]
    %v338 = vld [vmem:[#allocation10 + $0x24] sm:$0xf]
    %v339 = vld [vmem:[#allocation10 + $0x28] sm:$0xf]
    %v340 = vld [vmem:[#allocation10 + $0x2c] sm:$0xf]
    %v341 = vld [vmem:[#allocation10 + $0x30] sm:$0xf]
    %v342 = vld [vmem:[#allocation10 + $0x34] sm:$0xf]
    %v343 = vld [vmem:[#allocation10 + $0x38] sm:$0xf]
    %v344 = vld [vmem:[#allocation10 + $0x3c] sm:$0xf]
    %v345 = vld [vmem:[%s7] sm:$0x1]
    %v346 = vpack.c.bf16 %v328, %v328
    %v348 = vlaneseq
    %v349 = vshrl.u32 %v348, 7
    %v350 = vsub.s32 0, %v349
    %v351 = vrot.slane %v345, %v350
    %v369 = vunpack.c.l.b16 %v329
    %v370 = vunpack.c.l.b16 %v330
    %v371 = vunpack.c.l.b16 %v331
    %v372 = vunpack.c.l.b16 %v332
    %v373 = vunpack.c.l.b16 %v333
    %v374 = vunpack.c.l.b16 %v334
    %v375 = vunpack.c.l.b16 %v335
    %v376 = vunpack.c.l.b16 %v336
    %v377 = vunpack.c.l.b16 %v337
    %v378 = vunpack.c.l.b16 %v338
    %v379 = vunpack.c.l.b16 %v339
    %v380 = vunpack.c.l.b16 %v340
    %v381 = vunpack.c.l.b16 %v341
    %v382 = vunpack.c.l.b16 %v342
    %v383 = vunpack.c.l.b16 %v343
    %v384 = vunpack.c.l.b16 %v344
    %v385 = vpack.c.b16 %v370, %v369
    %v386 = vpack.c.b16 %v372, %v371
    %v387 = vpack.c.b16 %v374, %v373
    %v388 = vpack.c.b16 %v376, %v375
    %v389 = vpack.c.b16 %v378, %v377
    %v390 = vpack.c.b16 %v380, %v379
    %v391 = vpack.c.b16 %v382, %v381
    %v392 = vpack.c.b16 %v384, %v383
    %401 = vmatprep.subr.bf16.mxu0 0
    %402 = vmatpush1.bf16.msra.mxu0 %v385
    %403 = vmatprep.subr.bf16.mxu0 0
    %404 = vmatpush1.bf16.msra.mxu0 %v386
    %405 = vmatprep.subr.bf16.mxu0 0
    %406 = vmatpush1.bf16.msra.mxu0 %v387
    %407 = vmatprep.subr.bf16.mxu0 0
    %408 = vmatpush1.bf16.msra.mxu0 %v388
    %409 = vmatprep.subr.bf16.mxu0 0
    %410 = vmatpush1.bf16.msra.mxu0 %v389
    %411 = vmatprep.subr.bf16.mxu0 0
    %412 = vmatpush1.bf16.msra.mxu0 %v390
    %413 = vmatprep.subr.bf16.mxu0 0
    %414 = vmatpush1.bf16.msra.mxu0 %v391
    %415 = vmatprep.subr.bf16.mxu0 0
    %416 = vmatpush1.bf16.msra.mxu0 %v392
    %417 = vmatprep.subr.bf16.mxu0 0
    %418 = vmatpush1.bf16.msra.mxu0 0
    %419 = vmatprep.subr.bf16.mxu0 0
    %420 = vmatpush1.bf16.msra.mxu0 0
    %421 = vmatprep.subr.bf16.mxu0 0
    %422 = vmatpush1.bf16.msra.mxu0 0
    %423 = vmatprep.subr.bf16.mxu0 0
    %424 = vmatpush1.bf16.msra.mxu0 0
    %425 = vmatprep.subr.bf16.mxu0 0
    %426 = vmatpush1.bf16.msra.mxu0 0
    %427 = vmatprep.subr.bf16.mxu0 0
    %428 = vmatpush1.bf16.msra.mxu0 0
    %429 = vmatprep.subr.bf16.mxu0 0
    %430 = vmatpush1.bf16.msra.mxu0 0
    %431 = vmatprep.subr.bf16.mxu0 0
    %432 = vmatpush1.bf16.msra.mxu0 0
    %433 = vmatprep.mubr.bf16.mxu0 0
    %434 = vmatmul.mubr.bf16.gmra.mrb[0].mxu0 %v346
    %v435 = vpop.f32.mrb[0].mxu0
    %v436 = vadd.f32 %v351, %v435
    %v437 = vpop.f32.mrb[0].mxu0
    %v438 = vpop.f32.mrb[0].mxu0
    %v439 = vpop.f32.mrb[0].mxu0
    %440 = vdwg.mxu0
    %441 = vst [vmem:[#allocation11] sm:$0xff] %v436
    // Predicated region
    $region54: #{neural_net_forward.1} parent=1 // pred_check
      _
    $region55: #{neural_net_forward.1} parent=1 // pred_check_branch
      %443 = sbr.rel (0) target = $region57
    $region56: #{neural_net_forward.1} parent=1 // pred_region
      %s445 = ssub.s32 128, 128
      %446 = vsyncadd [#allocation4], %s445
      %s448 = sshll.u32 [#allocation11], 4
      %s449 = int_to_ptr.vmem [resolvable:$true] %s448
      %451 = dma.vmem_to_hbm [thread:$0]  %s449, 128, %s8, [#allocation4]
    $region57: #{neural_net_forward.1} parent=1 // pred_fallthru
      _
    // Predicated region
    $region58: #{neural_net_forward.1} parent=1 // pred_check
      _
    $region59: #{neural_net_forward.1} parent=1 // pred_check_branch
      %453 = sbr.rel (0) target = $region61
    $region60: #{neural_net_forward.1} parent=1 // pred_region
      %454 = dma.done [#allocation4], 128
    $region61: #{neural_net_forward.1} parent=1 // pred_fallthru
      _
    %455 = vsyncpa [#allocation3], 1
    %456 = vsyncpa [#allocation6], 1
    %457 = vsyncpa [#allocation9], 1
    %458 = vsyncpa [#allocation4], 1

</llo_original>
